<compile_context>
chip_gen: v5e
topology: v5e:2x2
jax: 0.10.0
libtpu: 0.0.40
codegen_flags: <defaults>
</compile_context>

<pallas_src>
import functools

import jax
import jax.numpy as jnp
from jax.experimental import pallas as pl
from jax.experimental.pallas import tpu as pltpu

_ACT_DTYPE = jnp.bfloat16


def _plugin_tile_kernel(x_ref, wt_ref, b_ref, o_ref):
    """One (sample-block, spatial-tile) block of the wrapped 1x1-conv layer.

    x_ref:  (TB, C_in,  TILE_HW)  lane-dense bf16 activation block
    wt_ref: (C_out, C_in)         full bf16 weight, VMEM-resident (const index_map)
    b_ref:  (C_out, 1)            f32 bias
    o_ref:  (TB, C_out, TILE_HW)  lane-dense bf16 output block
    """
    w = wt_ref[...]
    bias = b_ref[...]                         # (C_out, 1), broadcasts over lanes
    # TB is small and static (capped at 32) -> unrolled per-sample MXU matmuls.
    for i in range(x_ref.shape[0]):
        acc = jnp.dot(w, x_ref[i], preferred_element_type=jnp.float32)
        acc = acc + bias                      # f32 epilogue
        o_ref[i] = jnp.maximum(acc, 0.0).astype(o_ref.dtype)


def _choose_tiles(n, c_in, c_out, hw, act_bytes):
    """Pick (sample block TB, spatial tile tile_hw) for the pallas grid.

    Targets >= ~2 MiB of activation bytes per grid step (amortizes the
    ~0.35 us fixed step cost) while keeping the double-buffered in+out VMEM
    footprint under ~12 MiB -> fits v5e's 16 MiB default scoped VMEM and
    leaves >4x headroom on v7x's 64 MiB physical VMEM, so one code path is
    safe on v5e / v6e / v7x without touching vmem_limit_bytes.
    """
    VMEM_BUDGET = 12 << 20        # double-buffered in+out activation blocks
    TARGET_BLOCK = 2 << 20        # per-step activation bytes to aim for
    MAX_TILE_HW = 32768           # lane-tile cap
    MAX_TB = 32                   # bounds kernel unrolling / code size

    per_col = (c_in + c_out) * act_bytes      # bytes per lane column (in + out)

    # Spatial tile: multiple of 128, capped by MAX_TILE_HW, the (rounded-up)
    # problem size, and the VMEM budget at TB=1.
    cap = min(MAX_TILE_HW, VMEM_BUDGET // (2 * per_col))
    cap = max(128, cap - cap % 128)
    hw_ceil = ((hw + 127) // 128) * 128
    tile_hw = min(cap, hw_ceil)

    # Sample block: smallest divisor of n that reaches TARGET_BLOCK, while
    # staying inside the VMEM budget and the unroll cap.
    tb = 1
    for cand in range(1, min(n, MAX_TB) + 1):
        if n % cand:
            continue
        if 2 * cand * per_col * tile_hw > VMEM_BUDGET:
            break
        tb = cand
        if cand * per_col * tile_hw >= TARGET_BLOCK:
            break

    # v7x has 2 TensorCores sharing the ("parallel","parallel") grid; if the
    # whole problem collapsed to a single grid step, split the spatial axis so
    # both cores get work (harmless on single-TC v5e/v6e).
    if n // tb == 1 and pl.cdiv(hw, tile_hw) == 1 and tile_hw >= 256:
        half = tile_hw // 2
        tile_hw = max(128, half - half % 128)

    return tb, tile_hw


@functools.partial(jax.jit, static_argnames=("batch_size",))
def plugin_forward(x_nchw, weight, bias, *, batch_size=-1):
    """Plugin.forward: micro-batch over dim 0, apply inner layer, concat.

    x_nchw: (N, C_in, H, W)   activations (any float dtype; run as bf16)
    weight: (C_out, C_in)     1x1-conv weight (PyTorch conv layout, 1x1 squeezed)
    bias:   (C_out,)

    `batch_size` is accepted for API parity with Plugin; because the wrapped
    layer acts per-sample, micro-batching + cat(dim=0) does not change the
    math, so the Pallas tiling is chosen for the hardware instead.
    """
    del batch_size  # micro-batch grouping is a no-op for a per-sample layer
    N, C_in, H, W = x_nchw.shape
    C_out = weight.shape[0]
    HW = H * W

    # TODO(synk): Distributed().prepare_for_distributed / dynamic import /
    # layer_replacement are host-side config plumbing with no device compute.

    act_bytes = jnp.dtype(_ACT_DTYPE).itemsize
    tb, tile_hw = _choose_tiles(N, C_in, C_out, HW, act_bytes)

    # Pad H*W up to a multiple of the chosen 128-multiple tile so every block
    # is lane-dense and pipelined (no single giant fallback block).
    num_hw_tiles = pl.cdiv(HW, tile_hw)
    hw_pad = num_hw_tiles * tile_hw

    # Free reshape NCHW -> (N, C_in, H*W); H*W becomes the 128-lane axis.
    x_rows = x_nchw.reshape(N, C_in, HW).astype(_ACT_DTYPE)
    if hw_pad != HW:
        x_rows = jnp.pad(x_rows, ((0, 0), (0, 0), (0, hw_pad - HW)))

    weight_bf16 = weight.astype(_ACT_DTYPE)
    bias2d = bias.astype(jnp.float32).reshape(C_out, 1)

    out_rows = pl.pallas_call(
        _plugin_tile_kernel,
        out_shape=jax.ShapeDtypeStruct((N, C_out, hw_pad), _ACT_DTYPE),
        grid_spec=pltpu.PrefetchScalarGridSpec(
            num_scalar_prefetch=0,
            grid=(N // tb, num_hw_tiles),
            in_specs=[
                # (TB, C_in, tile_hw) activation block.
                pl.BlockSpec((tb, C_in, tile_hw), lambda n, t: (n, 0, t)),
                # Weight / bias: constant block index -> stay VMEM-resident.
                pl.BlockSpec((C_out, C_in), lambda n, t: (0, 0)),
                pl.BlockSpec((C_out, 1), lambda n, t: (0, 0)),
            ],
            # Each (sample-block, spatial-tile) writes its own contiguous
            # output block: this reproduces torch.cat(output, dim=0).
            out_specs=pl.BlockSpec((tb, C_out, tile_hw), lambda n, t: (n, 0, t)),
        ),
        compiler_params=pltpu.CompilerParams(
            # Both axes independent -> shardable across v7x's 2 TensorCores.
            dimension_semantics=("parallel", "parallel")),
    )(x_rows, weight_bf16, bias2d)

    if hw_pad != HW:
        out_rows = out_rows[:, :, :HW]
    # Free reshape back: (N, C_out, H*W) -> (N, C_out, H, W).
    return out_rows.reshape(N, C_out, H, W)


if __name__ == "__main__":
    key = jax.random.PRNGKey(0)
    kx, kw, kb = jax.random.split(key, 3)

    N, C_in, H, W = 2, 4, 16, 16   # H*W = 256 -> two 128-lane tiles
    C_out = 8
    batch_size = 1                 # Plugin micro-batch size (no-op per-sample)

    x = jax.random.normal(kx, (N, C_in, H, W), dtype=jnp.float32)
    # Deterministic synthetic parameters for the wrapped 1x1-conv layer.
    weight = jax.random.normal(kw, (C_out, C_in), dtype=jnp.float32) * 0.1
    bias = jax.random.normal(kb, (C_out,), dtype=jnp.float32) * 0.1

    out = plugin_forward(x, weight, bias, batch_size=batch_size)
    out = jax.block_until_ready(out)

    # Pure-JAX reference of the wrapped layer (1x1 conv + bias + ReLU), using
    # the same bf16 input/weight quantization the kernel sees; the remaining
    # difference is only the bf16 rounding of the stored output.
    xq = x.astype(jnp.bfloat16).astype(jnp.float32)
    wq = weight.astype(jnp.bfloat16).astype(jnp.float32)
    ref = jnp.maximum(
        jnp.einsum("nchw,oc->nohw", xq, wq) + bias[None, :, None, None], 0.0)

    assert out.shape == (N, C_out, H, W), out.shape
    assert out.dtype == jnp.bfloat16, out.dtype
    assert jnp.allclose(out.astype(jnp.float32), ref, atol=1e-2, rtol=1e-2), \
        "mismatch vs reference"

    print("KERNEL_OK")
</pallas_src>

<mosaic_0001>
module attributes {stable_mosaic.version = 11 : i64} {
  func.func @_plugin_tile_kernel(%arg0: i32, %arg1: i32, %arg2: memref<2x4x128xbf16, #tpu.memory_space<vmem>>, %arg3: memref<8x4xbf16, #tpu.memory_space<vmem>>, %arg4: memref<8x1xf32, #tpu.memory_space<vmem>>, %arg5: memref<2x8x128xbf16, #tpu.memory_space<vmem>>) attributes {dimension_semantics = [#tpu.dimension_semantics<parallel>, #tpu.dimension_semantics<parallel>], iteration_bounds = array<i64: 1, 2>, scalar_prefetch = 0 : i64, scratch_operands = 0 : i64, tpu.core_type = #tpu.core_type<tc>, window_params = [{transform_indices = @transform_0, window_bounds = array<i64: 2, 4, 128>}, {pipeline_mode = #tpu.pipeline_mode<synchronous>, transform_indices = @transform_1, window_bounds = array<i64: 8, 4>}, {pipeline_mode = #tpu.pipeline_mode<synchronous>, transform_indices = @transform_2, window_bounds = array<i64: 8, 1>}, {transform_indices = @transform_3, window_bounds = array<i64: 2, 8, 128>}]} {
    %c0 = arith.constant 0 : index
    %c0_0 = arith.constant 0 : index
    %0 = vector.load %arg3[%c0, %c0_0] : memref<8x4xbf16, #tpu.memory_space<vmem>>, vector<8x4xbf16>
    %c0_1 = arith.constant 0 : index
    %c0_2 = arith.constant 0 : index
    %1 = vector.load %arg4[%c0_1, %c0_2] : memref<8x1xf32, #tpu.memory_space<vmem>>, vector<8x1xf32>
    %c0_3 = arith.constant 0 : index
    %c0_4 = arith.constant 0 : index
    %c0_5 = arith.constant 0 : index
    %2 = vector.load %arg2[%c0_3, %c0_4, %c0_5] : memref<2x4x128xbf16, #tpu.memory_space<vmem>>, vector<1x4x128xbf16>
    %3 = vector.shape_cast %2 : vector<1x4x128xbf16> to vector<4x128xbf16>
    %cst = arith.constant dense<0.000000e+00> : vector<8x128xf32>
    %4 = tpu.matmul %0, %3, %cst {dimension_numbers = #tpu.dot_dimension_numbers<[1], [0], [0], [1], [0, 0, 1, 1], [], []>} : vector<8x4xbf16>, vector<4x128xbf16>, vector<8x128xf32> -> vector<8x128xf32>
    %5 = vector.broadcast %1 : vector<8x1xf32> to vector<8x128xf32>
    %6 = arith.addf %4, %5 : vector<8x128xf32>
    %cst_6 = arith.constant 0.000000e+00 : f32
    %7 = vector.broadcast %cst_6 : f32 to vector<8x128xf32>
    %8 = arith.maximumf %6, %7 : vector<8x128xf32>
    %9 = arith.truncf %8 : vector<8x128xf32> to vector<8x128xbf16>
    %c0_7 = arith.constant 0 : index
    %c0_8 = arith.constant 0 : index
    %c0_9 = arith.constant 0 : index
    %10 = vector.load %arg5[%c0_7, %c0_8, %c0_9] : memref<2x8x128xbf16, #tpu.memory_space<vmem>>, vector<1x8x128xbf16>
    %11 = vector.shape_cast %10 : vector<1x8x128xbf16> to vector<8x128xbf16>
    %12 = vector.shape_cast %9 : vector<8x128xbf16> to vector<1x8x128xbf16>
    tpu.vector_store %arg5[%c0_7, %c0_8, %c0_9], %12 {strides = array<i32>} : memref<2x8x128xbf16, #tpu.memory_space<vmem>>, vector<1x8x128xbf16>,
    %c1 = arith.constant 1 : index
    %c0_10 = arith.constant 0 : index
    %c0_11 = arith.constant 0 : index
    %13 = vector.load %arg2[%c1, %c0_10, %c0_11] : memref<2x4x128xbf16, #tpu.memory_space<vmem>>, vector<1x4x128xbf16>
    %14 = vector.shape_cast %13 : vector<1x4x128xbf16> to vector<4x128xbf16>
    %cst_12 = arith.constant dense<0.000000e+00> : vector<8x128xf32>
    %15 = tpu.matmul %0, %14, %cst_12 {dimension_numbers = #tpu.dot_dimension_numbers<[1], [0], [0], [1], [0, 0, 1, 1], [], []>} : vector<8x4xbf16>, vector<4x128xbf16>, vector<8x128xf32> -> vector<8x128xf32>
    %16 = vector.broadcast %1 : vector<8x1xf32> to vector<8x128xf32>
    %17 = arith.addf %15, %16 : vector<8x128xf32>
    %cst_13 = arith.constant 0.000000e+00 : f32
    %18 = vector.broadcast %cst_13 : f32 to vector<8x128xf32>
    %19 = arith.maximumf %17, %18 : vector<8x128xf32>
    %20 = arith.truncf %19 : vector<8x128xf32> to vector<8x128xbf16>
    %c1_14 = arith.constant 1 : index
    %c0_15 = arith.constant 0 : index
    %c0_16 = arith.constant 0 : index
    %21 = vector.load %arg5[%c1_14, %c0_15, %c0_16] : memref<2x8x128xbf16, #tpu.memory_space<vmem>>, vector<1x8x128xbf16>
    %22 = vector.shape_cast %21 : vector<1x8x128xbf16> to vector<8x128xbf16>
    %23 = vector.shape_cast %20 : vector<8x128xbf16> to vector<1x8x128xbf16>
    tpu.vector_store %arg5[%c1_14, %c0_15, %c0_16], %23 {strides = array<i32>} : memref<2x8x128xbf16, #tpu.memory_space<vmem>>, vector<1x8x128xbf16>,
    return
  }
  func.func @transform_0(%arg0: i32, %arg1: i32) -> (i32, i32, i32) {
    %c0_i32 = arith.constant 0 : i32
    %c0_i32_0 = arith.constant 0 : i32
    return %arg0, %c0_i32, %arg1 : i32, i32, i32
  }
  func.func @transform_1(%arg0: i32, %arg1: i32) -> (i32, i32) {
    %c0_i32 = arith.constant 0 : i32
    %c0_i32_0 = arith.constant 0 : i32
    %c0_i32_1 = arith.constant 0 : i32
    return %c0_i32, %c0_i32_0 : i32, i32
  }
  func.func @transform_2(%arg0: i32, %arg1: i32) -> (i32, i32) {
    %c0_i32 = arith.constant 0 : i32
    %c0_i32_0 = arith.constant 0 : i32
    %c0_i32_1 = arith.constant 0 : i32
    return %c0_i32, %c0_i32_0 : i32, i32
  }
  func.func @transform_3(%arg0: i32, %arg1: i32) -> (i32, i32, i32) {
    %c0_i32 = arith.constant 0 : i32
    %c0_i32_0 = arith.constant 0 : i32
    return %arg0, %c0_i32, %arg1 : i32, i32, i32
  }
}

</mosaic_0001>

<llo_original>
// kernel: plugin_forward.1
$region0: #{plugin_forward.1}
  #allocation0 [shape = 'u32[]', space=smem, size = 0x4, offset = 0x4, fixed_abs, tag = 'smem constant byte address 0x4 - core index']
  #allocation1 [shape = 'u32[72,128]{1,0:T(1,128)}', space=vmem, size = 0x9000, scoped, tag = 'internal scratch']
  %s0 = inlined_call_operand.vmem [shape: bf16[2,4,256], index: 0, kind: input, shape index: {}]
  %s1 = inlined_call_operand.vmem [shape: bf16[8,4], index: 1, kind: input, shape index: {}]
  %s2 = inlined_call_operand.vmem [shape: f32[8,1], index: 2, kind: input, shape index: {}]
  %s3 = inlined_call_operand.vmem [shape: bf16[2,8,256], index: 3, kind: output, shape index: {}]
  %s4 = sld [smem:[#allocation0]]
  $region116: #{plugin_forward.1} parent=0
    _
  %s6 = ssub.s32 1, %s4
  %s7 = scalar_select 0, %s6, %s4
  $region1: #{plugin_forward.1} parent=0
    #allocation2 [shape = 'u8[4096]{0}', space=vmem, size = 0x1000, scoped, tag = 'input window, operand 0']
    #allocation3 [shape = 'u8[8192]{0}', space=vmem, size = 0x2000, scoped, tag = 'output window, operand 0']
    loop: start=0, step=1, limit=4
    $region2: #{plugin_forward.1} parent=1 // loop_pre_header
      _
    $region3: #{plugin_forward.1} parent=1 // loop_header
      %s9 = sphi 0, %s13
      %p10 = scmp.ge.s32.totalorder %s9, 4
      %s16 = sphi 0, %s28
      %s17 = sphi 0, %s24
      %s18 = sphi 0, %s16
      %s19 = sphi 0, %s17
      %s20 = sphi 0, %s18
      %s21 = sphi 0, %s19
      %s33 = sphi 0, %s35
      %s36 = sphi 0, %s33
      %s37 = sphi 0, %s36
      %s53 = sphi 0, %s37
      %s57 = sphi 0, %s57
      %s59 = sphi 0, %s57
      %s60 = sphi 0, %s59
      %s74 = sphi 0, %s60
      %s78 = sphi 0, %s78
      %s80 = sphi 0, %s78
      %s81 = sphi 0, %s80
      %s95 = sphi 0, %s81
      %s103 = sphi 0, %s105
      %s106 = sphi 0, %s103
      %s107 = sphi 0, %s106
      %s123 = sphi 0, %s107
    $region4: #{plugin_forward.1} parent=1 // loop_header_branch
      %12 = sbr.rel (%p10) target = $region8
    $region5: #{plugin_forward.1} parent=1 // loop_body
      %s14 = ssub.s32 %s9, 1
      %s15 = ssub.s32 %s9, 2
      %s22 = sadd.s32 1, %s17
      %p23 = scmp.ge.s32.totalorder %s22, 2
      %s24 = scalar_select %p23, 0, %s22
      %s25 = sadd.s32 1, %s16
      %s26 = scalar_select %p23, %s25, %s16
      %p27 = scmp.ge.s32.totalorder %s26, 1
      %s28 = scalar_select %p27, 0, %s26
      %s29 = ssub.s32 %s16, %s28
      %s30 = ssub.s32 %s17, %s24
      %s31 = sor.u32 %s29, %s30
      %p32 = scmp.eq.s32.totalorder %s31, 0
      %s34 = sadd.s32 %s33, 1
      %s35 = scalar_select %p32, %s33, %s34
      %p38 = pneg %p32
      %p39 = scmp.eq.s32.totalorder %s9, 1
      %p40 = por %p38, %p39
      %p41 = scmp.ne.s32.totalorder %s33, %s36
      %p42 = scmp.eq.s32.totalorder %s9, 0
      %p43 = por %p41, %p42
      %p44 = scmp.ne.s32.totalorder %s33, %s36
      %p45 = scmp.eq.s32.totalorder %s14, 1
      %p46 = por %p44, %p45
      %p47 = scmp.ne.s32.totalorder %s36, %s37
      %p48 = scmp.eq.s32.totalorder %s14, 0
      %p49 = por %p47, %p48
      %p50 = scmp.ne.s32.totalorder %s36, %s37
      %p51 = scmp.eq.s32.totalorder %s15, 1
      %p52 = por %p50, %p51
      %p54 = scmp.ne.s32.totalorder %s37, %s53
      %p55 = scmp.eq.s32.totalorder %s15, 0
      %p56 = por %p54, %p55
      %s58 = sadd.s32 %s57, 1
      %p61 = scmp.eq.s32.totalorder %s9, 1
      %p62 = scmp.ne.s32.totalorder %s57, %s59
      %p63 = scmp.eq.s32.totalorder %s9, 0
      %p64 = por %p62, %p63
      %p65 = scmp.ne.s32.totalorder %s57, %s59
      %p66 = scmp.eq.s32.totalorder %s14, 1
      %p67 = por %p65, %p66
      %p68 = scmp.ne.s32.totalorder %s59, %s60
      %p69 = scmp.eq.s32.totalorder %s14, 0
      %p70 = por %p68, %p69
      %p71 = scmp.ne.s32.totalorder %s59, %s60
      %p72 = scmp.eq.s32.totalorder %s15, 1
      %p73 = por %p71, %p72
      %p75 = scmp.ne.s32.totalorder %s60, %s74
      %p76 = scmp.eq.s32.totalorder %s15, 0
      %p77 = por %p75, %p76
      %s79 = sadd.s32 %s78, 1
      %p82 = scmp.eq.s32.totalorder %s9, 1
      %p83 = scmp.ne.s32.totalorder %s78, %s80
      %p84 = scmp.eq.s32.totalorder %s9, 0
      %p85 = por %p83, %p84
      %p86 = scmp.ne.s32.totalorder %s78, %s80
      %p87 = scmp.eq.s32.totalorder %s14, 1
      %p88 = por %p86, %p87
      %p89 = scmp.ne.s32.totalorder %s80, %s81
      %p90 = scmp.eq.s32.totalorder %s14, 0
      %p91 = por %p89, %p90
      %p92 = scmp.ne.s32.totalorder %s80, %s81
      %p93 = scmp.eq.s32.totalorder %s15, 1
      %p94 = por %p92, %p93
      %p96 = scmp.ne.s32.totalorder %s81, %s95
      %p97 = scmp.eq.s32.totalorder %s15, 0
      %p98 = por %p96, %p97
      %s99 = ssub.s32 %s16, %s28
      %s100 = ssub.s32 %s17, %s24
      %s101 = sor.u32 %s99, %s100
      %p102 = scmp.eq.s32.totalorder %s101, 0
      %s104 = sadd.s32 %s103, 1
      %s105 = scalar_select %p102, %s103, %s104
      %p108 = pneg %p102
      %p109 = scmp.eq.s32.totalorder %s9, 1
      %p110 = por %p108, %p109
      %p111 = scmp.ne.s32.totalorder %s103, %s106
      %p112 = scmp.eq.s32.totalorder %s9, 0
      %p113 = por %p111, %p112
      %p114 = scmp.ne.s32.totalorder %s103, %s106
      %p115 = scmp.eq.s32.totalorder %s14, 1
      %p116 = por %p114, %p115
      %p117 = scmp.ne.s32.totalorder %s106, %s107
      %p118 = scmp.eq.s32.totalorder %s14, 0
      %p119 = por %p117, %p118
      %p120 = scmp.ne.s32.totalorder %s106, %s107
      %p121 = scmp.eq.s32.totalorder %s15, 1
      %p122 = por %p120, %p121
      %p124 = scmp.ne.s32.totalorder %s107, %s123
      %p125 = scmp.eq.s32.totalorder %s15, 0
      %p126 = por %p124, %p125
      %p127 = scmp.le.s32.totalorder 1, %s9
      %p128 = scmp.lt.s32.totalorder %s9, 3
      %p129 = pnand %p127, %p128
      %p130 = pneg %p129
      // Predicated region
      $region9: #{plugin_forward.1} parent=5 // pred_check
        _
      $region10: #{plugin_forward.1} parent=5 // pred_check_branch
        %132 = sbr.rel (%p129) target = $region12
      $region11: #{plugin_forward.1} parent=5 // pred_region
        %s133 = ssub.s32 %s9, 1
        // Predicated region
        $region13: #{plugin_forward.1} parent=11 // pred_check
          %p134 = pneg %p70
        $region14: #{plugin_forward.1} parent=11 // pred_check_branch
          %136 = sbr.rel (%p134) target = $region16
        $region15: #{plugin_forward.1} parent=11 // pred_region
          _
        $region16: #{plugin_forward.1} parent=11 // pred_fallthru
          _
        // Predicated region
        $region17: #{plugin_forward.1} parent=11 // pred_check
          %p137 = pneg %p91
        $region18: #{plugin_forward.1} parent=11 // pred_check_branch
          %139 = sbr.rel (%p137) target = $region20
        $region19: #{plugin_forward.1} parent=11 // pred_region
          _
        $region20: #{plugin_forward.1} parent=11 // pred_fallthru
          _
      $region12: #{plugin_forward.1} parent=5 // pred_fallthru
        _
      %p140 = scmp.lt.s32.totalorder %s9, 2
      // Predicated region
      $region21: #{plugin_forward.1} parent=5 // pred_check
        %p141 = pneg %p140
      $region22: #{plugin_forward.1} parent=5 // pred_check_branch
        %143 = sbr.rel (%p141) target = $region24
      $region23: #{plugin_forward.1} parent=5 // pred_region
        // Predicated region
        $region25: #{plugin_forward.1} parent=23 // pred_check
          %p144 = pneg %p43
        $region26: #{plugin_forward.1} parent=23 // pred_check_branch
          %146 = sbr.rel (%p144) target = $region28
        $region27: #{plugin_forward.1} parent=23 // pred_region
          %s147 = sand.u32 %s33, 1
          %s148 = sand.u32 %s33, 1
          %s149 = smul.addr %s148, 4
          %s150 = scalar_lea.vmem [#allocation2], %s149
          %s151 = smul.u32 2, %s16
          %s152 = smul.addr %s151, 2
          %s153 = sadd.s32 %s17, %s152
          %s154 = smul.addr %s153, 2
          %s155 = scalar_lea.vmem %s0, %s154
          // Predicated region
          $region29: #{plugin_forward.1} parent=27 // pred_check
            _
          $region30: #{plugin_forward.1} parent=27 // pred_check_branch
            %157 = sbr.rel (0) target = $region32
          $region31: #{plugin_forward.1} parent=27 // pred_region
            // Predicated region
            $region33: #{plugin_forward.1} parent=31 // pred_check
              _
            $region34: #{plugin_forward.1} parent=31 // pred_check_branch
              %159 = sbr.rel target = $region36
            $region35: #{plugin_forward.1} parent=31 // pred_region
              // Predicated region
              $region48: #{plugin_forward.1} parent=35 // pred_check
                _
              $region49: #{plugin_forward.1} parent=35 // pred_check_branch
                %177 = sbr.rel (0) target = $region51
              $region50: #{plugin_forward.1} parent=35 // pred_region
                %s179 = ssub.s32 4, 1
                loop: start=0, step=1, limit=1
                $region52: #{plugin_forward.1} parent=50 // loop_pre_header
                  _
                $region53: #{plugin_forward.1} parent=50 // loop_header
                  %s181 = sphi 0, %s185
                  %p182 = scmp.ge.s32.totalorder %s181, 1
                  %s186 = sphi %s155, %s155
                  %s187 = sphi %s150, %s150
                $region54: #{plugin_forward.1} parent=50 // loop_header_branch
                  %184 = sbr.rel (%p182) target = $region58
                $region55: #{plugin_forward.1} parent=50 // loop_body
                  %v188 = vld [vmem:[%s186] sm:%s179]
                  %189 = vst [vmem:[%s187] sm:%s179] %v188
                  %v190 = vld [vmem:[%s186 + $0x4] sm:%s179]
                  %191 = vst [vmem:[%s187 + $0x2] sm:%s179] %v190
                $region56: #{plugin_forward.1} parent=50 // loop_footer
                  %s185 = sadd.s32 1, %s181
                $region57: #{plugin_forward.1} parent=50 // loop_footer_branch
                  %180 = sbr.rel target = $region53
                $region58: #{plugin_forward.1} parent=50 // loop_exit
                  _
              $region51: #{plugin_forward.1} parent=35 // pred_fallthru
                _
            $region36: #{plugin_forward.1} parent=31 // pred_fallthru
              _
            // Predicated region
            $region37: #{plugin_forward.1} parent=31 // pred_check
              _
            $region38: #{plugin_forward.1} parent=31 // pred_check_branch
              %161 = sbr.rel (0) target = $region40
            $region39: #{plugin_forward.1} parent=31 // pred_region
              %s163 = ssub.s32 4, 1
              loop: start=0, step=1, limit=1
              $region41: #{plugin_forward.1} parent=39 // loop_pre_header
                _
              $region42: #{plugin_forward.1} parent=39 // loop_header
                %s165 = sphi 0, %s169
                %p166 = scmp.ge.s32.totalorder %s165, 1
                %s170 = sphi %s155, %s155
                %s171 = sphi %s150, %s150
              $region43: #{plugin_forward.1} parent=39 // loop_header_branch
                %168 = sbr.rel (%p166) target = $region47
              $region44: #{plugin_forward.1} parent=39 // loop_body
                %v172 = vld [vmem:[%s170] sm:%s163]
                %173 = vst [vmem:[%s171] sm:%s163] %v172
                %v174 = vld [vmem:[%s170 + $0x4] sm:%s163]
                %175 = vst [vmem:[%s171 + $0x2] sm:%s163] %v174
              $region45: #{plugin_forward.1} parent=39 // loop_footer
                %s169 = sadd.s32 1, %s165
              $region46: #{plugin_forward.1} parent=39 // loop_footer_branch
                %164 = sbr.rel target = $region42
              $region47: #{plugin_forward.1} parent=39 // loop_exit
                _
            $region40: #{plugin_forward.1} parent=31 // pred_fallthru
              _
          $region32: #{plugin_forward.1} parent=27 // pred_fallthru
            _
          %192 = vnop
        $region28: #{plugin_forward.1} parent=23 // pred_fallthru
          _
      $region24: #{plugin_forward.1} parent=5 // pred_fallthru
        _
      %p193 = scmp.le.s32.totalorder 1, %s9
      %p194 = scmp.lt.s32.totalorder %s9, 3
      %p195 = pnand %p193, %p194
      %p196 = pneg %p195
      // Predicated region
      $region59: #{plugin_forward.1} parent=5 // pred_check
        _
      $region60: #{plugin_forward.1} parent=5 // pred_check_branch
        %198 = sbr.rel (%p195) target = $region62
      $region61: #{plugin_forward.1} parent=5 // pred_region
        %s199 = ssub.s32 %s9, 1
        %s200 = sand.u32 %s36, 1
        %s201 = sand.u32 %s36, 1
        %s202 = smul.addr %s201, 4
        %s203 = scalar_lea.vmem [#allocation2], %s202
        // Predicated region
        $region63: #{plugin_forward.1} parent=61 // pred_check
          %p204 = pneg %p49
        $region64: #{plugin_forward.1} parent=61 // pred_check_branch
          %206 = sbr.rel (%p204) target = $region66
        $region65: #{plugin_forward.1} parent=61 // pred_region
          _
        $region66: #{plugin_forward.1} parent=61 // pred_fallthru
          _
        %s207 = sand.u32 %s36, 1
        %s208 = sand.u32 %s36, 1
        %s209 = smul.addr %s208, 4
        %s210 = scalar_lea.vmem [#allocation2], %s209
        %p211 = pneg %p49
        %p212 = pneg %p46
        %p213 = pneg %p70
        %p214 = pneg %p67
        %p215 = pneg %p91
        %p216 = pneg %p88
        %p217 = pneg %p119
        %p218 = pneg %p116
        %s219 = sand.u32 %s106, 1
        %s220 = sand.u32 %s106, 1
        %s221 = smul.addr %s220, 8
        %s222 = scalar_lea.vmem [#allocation3], %s221
        %s223 = smul.u32 2, %s18
        %s224 = smul.u32 2, %s18
        %v226 = vld [vmem:[%s1] sm:$0xf]
        %v227 = vld [vmem:[%s2] sm:$0xff]
        %v228 = vld [vmem:[%s203] sm:$0x3]
        %230 = vset.pattern.permute.xlu0 0
        %231 = vperm.xlu0 %230, %v227
        %v232 = vpop.permute.xlu0 %231
        %vm234 = vcmask 31744
        %v236 = vsel %vm234, %v226, 0
        %vm238 = vcmask 1041408
        %v240 = vsel %vm238, %v228, 0
        %242 = vmatpush.bf16.msra.mxu0 0
        %243 = vmatpush.bf16.msra.mxu0 0
        %244 = vmatpush.bf16.msra.mxu0 0
        %245 = vmatpush.bf16.msra.mxu0 0
        %246 = vmatpush.bf16.msra.mxu0 0
        %247 = vmatpush.bf16.msra.mxu0 0
        %248 = vmatpush.bf16.msra.mxu0 0
        %249 = vmatpush.bf16.msra.mxu0 %v240
        %250 = vmatmul.bf16.gmra.mxu0 %v236
        %v251 = vpop.f32.mrf.mxu0
        %v252 = vadd.f32 %v232, %v251
        %v253 = vpop.f32.mrf.mxu0
        %254 = vdwg.mxu0
        %v255 = vmax.f32 %v252, 0.0
        %v256 = vpack.c.bf16 %v255, %v255
        %257 = vst [vmem:[%s222] sm:$0xf] %v256
        %s258 = scalar_lea.vmem %s203, 2 [#allocation2]
        %v259 = vld [vmem:[%s258] sm:$0x3]
        %v261 = vsel %vm238, %v259, 0
        %263 = vmatpush.bf16.msra.mxu0 0
        %264 = vmatpush.bf16.msra.mxu0 0
        %265 = vmatpush.bf16.msra.mxu0 0
        %266 = vmatpush.bf16.msra.mxu0 0
        %267 = vmatpush.bf16.msra.mxu0 0
        %268 = vmatpush.bf16.msra.mxu0 0
        %269 = vmatpush.bf16.msra.mxu0 0
        %270 = vmatpush.bf16.msra.mxu0 %v261
        %271 = vmatmul.bf16.gmra.mxu0 %v236
        %v272 = vpop.f32.mrf.mxu0
        %v273 = vadd.f32 %v232, %v272
        %v274 = vpop.f32.mrf.mxu0
        %275 = vdwg.mxu0
        %v276 = vmax.f32 %v273, 0.0
        %v277 = vpack.c.bf16 %v276, %v276
        %s278 = scalar_lea.vmem %s222, 4 [#allocation3]
        %279 = vst [vmem:[%s278] sm:$0xf] %v277
        %s280 = sand.u32 %s106, 1
        %s281 = sand.u32 %s106, 1
        %s282 = smul.addr %s281, 8
        %s283 = scalar_lea.vmem [#allocation3], %s282
        // Predicated region
        $region67: #{plugin_forward.1} parent=61 // pred_check
          %p284 = pneg %p116
        $region68: #{plugin_forward.1} parent=61 // pred_check_branch
          %286 = sbr.rel (%p284) target = $region70
        $region69: #{plugin_forward.1} parent=61 // pred_region
          %s287 = smul.u32 2, %s18
          %s288 = smul.addr %s287, 2
          %s289 = sadd.s32 %s19, %s288
          %s290 = smul.addr %s289, 4
          %s291 = scalar_lea.vmem %s3, %s290
          // Predicated region
          $region71: #{plugin_forward.1} parent=69 // pred_check
            _
          $region72: #{plugin_forward.1} parent=69 // pred_check_branch
            %293 = sbr.rel (0) target = $region74
          $region73: #{plugin_forward.1} parent=69 // pred_region
            // Predicated region
            $region75: #{plugin_forward.1} parent=73 // pred_check
              _
            $region76: #{plugin_forward.1} parent=73 // pred_check_branch
              %295 = sbr.rel target = $region78
            $region77: #{plugin_forward.1} parent=73 // pred_region
              // Predicated region
              $region90: #{plugin_forward.1} parent=77 // pred_check
                _
              $region91: #{plugin_forward.1} parent=77 // pred_check_branch
                %313 = sbr.rel (0) target = $region93
              $region92: #{plugin_forward.1} parent=77 // pred_region
                loop: start=0, step=1, limit=1
                $region94: #{plugin_forward.1} parent=92 // loop_pre_header
                  _
                $region95: #{plugin_forward.1} parent=92 // loop_header
                  %s315 = sphi 0, %s319
                  %p316 = scmp.ge.s32.totalorder %s315, 1
                  %s320 = sphi %s283, %s283
                  %s321 = sphi %s291, %s291
                $region96: #{plugin_forward.1} parent=92 // loop_header_branch
                  %318 = sbr.rel (%p316) target = $region100
                $region97: #{plugin_forward.1} parent=92 // loop_body
                  _
                $region98: #{plugin_forward.1} parent=92 // loop_footer
                  %s319 = sadd.s32 1, %s315
                $region99: #{plugin_forward.1} parent=92 // loop_footer_branch
                  %314 = sbr.rel target = $region95
                $region100: #{plugin_forward.1} parent=92 // loop_exit
                  _
                %s323 = ssub.s32 16, 1
                loop: start=0, step=1, limit=1
                $region101: #{plugin_forward.1} parent=92 // loop_pre_header
                  _
                $region102: #{plugin_forward.1} parent=92 // loop_header
                  %s325 = sphi 0, %s329
                  %p326 = scmp.ge.s32.totalorder %s325, 1
                  %s330 = sphi %s283, %s283
                  %s331 = sphi %s291, %s291
                $region103: #{plugin_forward.1} parent=92 // loop_header_branch
                  %328 = sbr.rel (%p326) target = $region107
                $region104: #{plugin_forward.1} parent=92 // loop_body
                  %v332 = vld [vmem:[%s330] sm:%s323]
                  %333 = vst [vmem:[%s331] sm:%s323] %v332
                  %v334 = vld [vmem:[%s330 + $0x4] sm:%s323]
                  %335 = vst [vmem:[%s331 + $0x8] sm:%s323] %v334
                $region105: #{plugin_forward.1} parent=92 // loop_footer
                  %s329 = sadd.s32 1, %s325
                $region106: #{plugin_forward.1} parent=92 // loop_footer_branch
                  %324 = sbr.rel target = $region102
                $region107: #{plugin_forward.1} parent=92 // loop_exit
                  _
              $region93: #{plugin_forward.1} parent=77 // pred_fallthru
                _
            $region78: #{plugin_forward.1} parent=73 // pred_fallthru
              _
            // Predicated region
            $region79: #{plugin_forward.1} parent=73 // pred_check
              _
            $region80: #{plugin_forward.1} parent=73 // pred_check_branch
              %297 = sbr.rel (0) target = $region82
            $region81: #{plugin_forward.1} parent=73 // pred_region
              %s299 = ssub.s32 16, 1
              loop: start=0, step=1, limit=1
              $region83: #{plugin_forward.1} parent=81 // loop_pre_header
                _
              $region84: #{plugin_forward.1} parent=81 // loop_header
                %s301 = sphi 0, %s305
                %p302 = scmp.ge.s32.totalorder %s301, 1
                %s306 = sphi %s283, %s283
                %s307 = sphi %s291, %s291
              $region85: #{plugin_forward.1} parent=81 // loop_header_branch
                %304 = sbr.rel (%p302) target = $region89
              $region86: #{plugin_forward.1} parent=81 // loop_body
                %v308 = vld [vmem:[%s306] sm:%s299]
                %309 = vst [vmem:[%s307] sm:%s299] %v308
                %v310 = vld [vmem:[%s306 + $0x4] sm:%s299]
                %311 = vst [vmem:[%s307 + $0x8] sm:%s299] %v310
              $region87: #{plugin_forward.1} parent=81 // loop_footer
                %s305 = sadd.s32 1, %s301
              $region88: #{plugin_forward.1} parent=81 // loop_footer_branch
                %300 = sbr.rel target = $region84
              $region89: #{plugin_forward.1} parent=81 // loop_exit
                _
            $region82: #{plugin_forward.1} parent=73 // pred_fallthru
              _
          $region74: #{plugin_forward.1} parent=69 // pred_fallthru
            _
          %336 = vnop
        $region70: #{plugin_forward.1} parent=61 // pred_fallthru
          _
      $region62: #{plugin_forward.1} parent=5 // pred_fallthru
        _
      %p337 = scmp.le.s32.totalorder 2, %s9
      // Predicated region
      $region108: #{plugin_forward.1} parent=5 // pred_check
        %p338 = pneg %p337
      $region109: #{plugin_forward.1} parent=5 // pred_check_branch
        %340 = sbr.rel (%p338) target = $region111
      $region110: #{plugin_forward.1} parent=5 // pred_region
        %s341 = ssub.s32 %s9, 2
        // Predicated region
        $region112: #{plugin_forward.1} parent=110 // pred_check
          %p342 = pneg %p122
        $region113: #{plugin_forward.1} parent=110 // pred_check_branch
          %344 = sbr.rel (%p342) target = $region115
        $region114: #{plugin_forward.1} parent=110 // pred_region
          %s345 = sand.u32 %s107, 1
          %s346 = sand.u32 %s107, 1
          %s347 = smul.addr %s346, 8
          %s348 = scalar_lea.vmem [#allocation3], %s347
        $region115: #{plugin_forward.1} parent=110 // pred_fallthru
          _
      $region111: #{plugin_forward.1} parent=5 // pred_fallthru
        _
    $region6: #{plugin_forward.1} parent=1 // loop_footer
      %s13 = sadd.s32 1, %s9
    $region7: #{plugin_forward.1} parent=1 // loop_footer_branch
      %8 = sbr.rel target = $region3
    $region8: #{plugin_forward.1} parent=1 // loop_exit
      _

</llo_original>
